<compile_context>
chip_gen: v6e
topology: v6e:2x2x1
jax: 0.10.0
libtpu: 0.0.40
codegen_flags: <defaults>
</compile_context>

<pallas_src>
import jax
import jax.numpy as jnp
from jax.experimental import pallas as pl
from jax.experimental.pallas import tpu as pltpu

IN_DIM, H1, H2, OUT_DIM = 13, 64, 32, 2


def audionet_kernel(x_ref, w1_ref, b1_ref, w2_ref, b2_ref, w3_ref, b3_ref, o_ref):
    # Feature-major: x is (IN_DIM, tb), batch on the lane axis.
    x = x_ref[...]

    h1 = jnp.dot(w1_ref[...], x, preferred_element_type=jnp.float32) + b1_ref[...]
    h1 = jnp.maximum(h1, 0.0)                                       # relu(fc1) -> (64, tb)

    h2 = jnp.dot(w2_ref[...], h1, preferred_element_type=jnp.float32) + b2_ref[...]
    h2 = jnp.maximum(h2, 0.0)                                       # relu(fc2) -> (32, tb)

    out = jnp.dot(w3_ref[...], h2, preferred_element_type=jnp.float32) + b3_ref[...]
    o_ref[...] = out.astype(o_ref.dtype)                            # lane-dense (2, tb) store


def _round_up(n, m):
    return ((n + m - 1) // m) * m


def _pick_batch_tile(b_padded, cap=8192):
    """Largest multiple of 128 <= cap that divides b_padded (b_padded % 128 == 0)."""
    t = min(cap, b_padded)
    t -= t % 128
    t = max(t, 128)
    while b_padded % t != 0:
        t -= 128
    return t


def audionet_forward(x, params, *, batch_tile=None):
    """x: (B, 13) float32. params: torch-layout weights (out,in), biases (out,1)."""
    B = x.shape[0]
    Bp = _round_up(max(B, 1), 128)                   # always lane-dense tiles
    tb = _pick_batch_tile(Bp) if batch_tile is None else batch_tile
    assert Bp % tb == 0 and tb % 128 == 0
    grid = (Bp // tb,)

    # Layout plumbing only: feature-major (13, Bp) slab, zero-padded batch tail.
    xT = x.T
    if Bp != B:
        xT = jnp.pad(xT, ((0, 0), (0, Bp - B)))

    # Tiny resident parameters: constant block index -> fetched once into VMEM.
    def full(shape):
        return pl.BlockSpec(shape, lambda i: (0, 0))

    flops = 2 * Bp * (IN_DIM * H1 + H1 * H2 + H2 * OUT_DIM)
    param_bytes = 4 * (H1 * IN_DIM + H1 + H2 * H1 + H2 + OUT_DIM * H2 + OUT_DIM)
    bytes_accessed = 4 * Bp * (IN_DIM + OUT_DIM) + param_bytes

    outT = pl.pallas_call(
        audionet_kernel,
        out_shape=jax.ShapeDtypeStruct((OUT_DIM, Bp), jnp.float32),
        grid_spec=pltpu.PrefetchScalarGridSpec(
            num_scalar_prefetch=0,
            grid=grid,
            in_specs=[
                pl.BlockSpec((IN_DIM, tb), lambda i: (0, i)),   # x tile, batch on lanes
                full((H1, IN_DIM)),  full((H1, 1)),             # fc1: W (64,13), b (64,1)
                full((H2, H1)),      full((H2, 1)),             # fc2: W (32,64), b (32,1)
                full((OUT_DIM, H2)), full((OUT_DIM, 1)),        # out: W (2,32),  b (2,1)
            ],
            out_specs=pl.BlockSpec((OUT_DIM, tb), lambda i: (0, i)),
        ),
        compiler_params=pltpu.CompilerParams(
            dimension_semantics=("parallel",),                  # batch axis shards on v7x
        ),
        cost_estimate=pl.CostEstimate(
            flops=flops, transcendentals=0, bytes_accessed=bytes_accessed),
    )(xT, params["w1"], params["b1"], params["w2"], params["b2"],
      params["w3"], params["b3"])

    return outT[:, :B].T                                        # back to (B, OUT_DIM)


def init_params(key):
    """Deterministic init mirroring torch.nn.Linear default (U[-1/sqrt(fan_in), +]),
    stored in torch layout: W (out_features, in_features), b (out_features, 1)."""
    def linear(key, fan_in, fan_out):
        kw, kb = jax.random.split(key)
        bound = 1.0 / jnp.sqrt(fan_in)
        w = jax.random.uniform(kw, (fan_out, fan_in), jnp.float32, -bound, bound)
        b = jax.random.uniform(kb, (fan_out, 1), jnp.float32, -bound, bound)
        return w, b

    k1, k2, k3 = jax.random.split(key, 3)
    w1, b1 = linear(k1, IN_DIM, H1)
    w2, b2 = linear(k2, H1, H2)
    w3, b3 = linear(k3, H2, OUT_DIM)
    return {"w1": w1, "b1": b1, "w2": w2, "b2": b2, "w3": w3, "b3": b3}


def reference_forward(x, p):
    h1 = jnp.maximum(x @ p["w1"].T + p["b1"].T, 0.0)
    h2 = jnp.maximum(h1 @ p["w2"].T + p["b2"].T, 0.0)
    return h2 @ p["w3"].T + p["b3"].T


if __name__ == "__main__":
    key = jax.random.PRNGKey(0)
    kx, kx2, kp = jax.random.split(key, 3)
    params = init_params(kp)

    # Case 1: tiled batch -> exercises the multi-step grid / lane-dense output path.
    B = 256
    x = jax.random.normal(kx, (B, IN_DIM), jnp.float32)
    out = jax.block_until_ready(audionet_forward(x, params, batch_tile=128))
    ref = reference_forward(x, params)
    assert out.shape == (B, OUT_DIM)
    assert jnp.allclose(out, ref, atol=1e-5, rtol=1e-5), "mismatch vs pure-JAX reference (tiled)"

    # Case 2: small batch -> padded to one lane-dense 128-wide tile, then sliced back.
    xs = jax.random.normal(kx2, (8, IN_DIM), jnp.float32)
    outs = jax.block_until_ready(audionet_forward(xs, params))
    refs = reference_forward(xs, params)
    assert outs.shape == (8, OUT_DIM)
    assert jnp.allclose(outs, refs, atol=1e-5, rtol=1e-5), "mismatch vs pure-JAX reference (small)"

    print("KERNEL_OK")
</pallas_src>

<mosaic_0001>
module attributes {stable_mosaic.version = 11 : i64} {
  func.func @audionet_kernel(%arg0: i32, %arg1: memref<13x128xf32, #tpu.memory_space<vmem>>, %arg2: memref<64x13xf32, #tpu.memory_space<vmem>>, %arg3: memref<64x1xf32, #tpu.memory_space<vmem>>, %arg4: memref<32x64xf32, #tpu.memory_space<vmem>>, %arg5: memref<32x1xf32, #tpu.memory_space<vmem>>, %arg6: memref<2x32xf32, #tpu.memory_space<vmem>>, %arg7: memref<2x1xf32, #tpu.memory_space<vmem>>, %arg8: memref<2x128xf32, #tpu.memory_space<vmem>>) attributes {dimension_semantics = [#tpu.dimension_semantics<parallel>], iteration_bounds = array<i64: 2>, scalar_prefetch = 0 : i64, scratch_operands = 0 : i64, tpu.core_type = #tpu.core_type<tc>, window_params = [{transform_indices = @transform_0, window_bounds = array<i64: 13, 128>}, {pipeline_mode = #tpu.pipeline_mode<synchronous>, transform_indices = @transform_1, window_bounds = array<i64: 64, 13>}, {pipeline_mode = #tpu.pipeline_mode<synchronous>, transform_indices = @transform_2, window_bounds = array<i64: 64, 1>}, {pipeline_mode = #tpu.pipeline_mode<synchronous>, transform_indices = @transform_3, window_bounds = array<i64: 32, 64>}, {pipeline_mode = #tpu.pipeline_mode<synchronous>, transform_indices = @transform_4, window_bounds = array<i64: 32, 1>}, {pipeline_mode = #tpu.pipeline_mode<synchronous>, transform_indices = @transform_5, window_bounds = array<i64: 2, 32>}, {pipeline_mode = #tpu.pipeline_mode<synchronous>, transform_indices = @transform_6, window_bounds = array<i64: 2, 1>}, {transform_indices = @transform_7, window_bounds = array<i64: 2, 128>}]} {
    %c0 = arith.constant 0 : index
    %c0_0 = arith.constant 0 : index
    %0 = vector.load %arg1[%c0, %c0_0] : memref<13x128xf32, #tpu.memory_space<vmem>>, vector<13x128xf32>
    %c0_1 = arith.constant 0 : index
    %c0_2 = arith.constant 0 : index
    %1 = vector.load %arg2[%c0_1, %c0_2] : memref<64x13xf32, #tpu.memory_space<vmem>>, vector<64x13xf32>
    %cst = arith.constant dense<0.000000e+00> : vector<64x128xf32>
    %2 = tpu.matmul %1, %0, %cst {dimension_numbers = #tpu.dot_dimension_numbers<[1], [0], [0], [1], [0, 0, 1, 1], [], []>} : vector<64x13xf32>, vector<13x128xf32>, vector<64x128xf32> -> vector<64x128xf32>
    %c0_3 = arith.constant 0 : index
    %c0_4 = arith.constant 0 : index
    %3 = vector.load %arg3[%c0_3, %c0_4] : memref<64x1xf32, #tpu.memory_space<vmem>>, vector<64x1xf32>
    %4 = vector.broadcast %3 : vector<64x1xf32> to vector<64x128xf32>
    %5 = arith.addf %2, %4 : vector<64x128xf32>
    %cst_5 = arith.constant 0.000000e+00 : f32
    %6 = vector.broadcast %cst_5 : f32 to vector<64x128xf32>
    %7 = arith.maximumf %5, %6 : vector<64x128xf32>
    %c0_6 = arith.constant 0 : index
    %c0_7 = arith.constant 0 : index
    %8 = vector.load %arg4[%c0_6, %c0_7] : memref<32x64xf32, #tpu.memory_space<vmem>>, vector<32x64xf32>
    %cst_8 = arith.constant dense<0.000000e+00> : vector<32x128xf32>
    %9 = tpu.matmul %8, %7, %cst_8 {dimension_numbers = #tpu.dot_dimension_numbers<[1], [0], [0], [1], [0, 0, 1, 1], [], []>} : vector<32x64xf32>, vector<64x128xf32>, vector<32x128xf32> -> vector<32x128xf32>
    %c0_9 = arith.constant 0 : index
    %c0_10 = arith.constant 0 : index
    %10 = vector.load %arg5[%c0_9, %c0_10] : memref<32x1xf32, #tpu.memory_space<vmem>>, vector<32x1xf32>
    %11 = vector.broadcast %10 : vector<32x1xf32> to vector<32x128xf32>
    %12 = arith.addf %9, %11 : vector<32x128xf32>
    %cst_11 = arith.constant 0.000000e+00 : f32
    %13 = vector.broadcast %cst_11 : f32 to vector<32x128xf32>
    %14 = arith.maximumf %12, %13 : vector<32x128xf32>
    %c0_12 = arith.constant 0 : index
    %c0_13 = arith.constant 0 : index
    %15 = vector.load %arg6[%c0_12, %c0_13] : memref<2x32xf32, #tpu.memory_space<vmem>>, vector<2x32xf32>
    %cst_14 = arith.constant dense<0.000000e+00> : vector<2x128xf32>
    %16 = tpu.matmul %15, %14, %cst_14 {dimension_numbers = #tpu.dot_dimension_numbers<[1], [0], [0], [1], [0, 0, 1, 1], [], []>} : vector<2x32xf32>, vector<32x128xf32>, vector<2x128xf32> -> vector<2x128xf32>
    %c0_15 = arith.constant 0 : index
    %c0_16 = arith.constant 0 : index
    %17 = vector.load %arg7[%c0_15, %c0_16] : memref<2x1xf32, #tpu.memory_space<vmem>>, vector<2x1xf32>
    %18 = vector.broadcast %17 : vector<2x1xf32> to vector<2x128xf32>
    %19 = arith.addf %16, %18 : vector<2x128xf32>
    %c0_17 = arith.constant 0 : index
    %c0_18 = arith.constant 0 : index
    %20 = vector.load %arg8[%c0_17, %c0_18] : memref<2x128xf32, #tpu.memory_space<vmem>>, vector<2x128xf32>
    tpu.vector_store %arg8[%c0_17, %c0_18], %19 {strides = array<i32>} : memref<2x128xf32, #tpu.memory_space<vmem>>, vector<2x128xf32>,
    return
  }
  func.func @transform_0(%arg0: i32) -> (i32, i32) {
    %c0_i32 = arith.constant 0 : i32
    %c0_i32_0 = arith.constant 0 : i32
    return %c0_i32, %arg0 : i32, i32
  }
  func.func @transform_1(%arg0: i32) -> (i32, i32) {
    %c0_i32 = arith.constant 0 : i32
    %c0_i32_0 = arith.constant 0 : i32
    %c0_i32_1 = arith.constant 0 : i32
    return %c0_i32, %c0_i32_0 : i32, i32
  }
  func.func @transform_2(%arg0: i32) -> (i32, i32) {
    %c0_i32 = arith.constant 0 : i32
    %c0_i32_0 = arith.constant 0 : i32
    %c0_i32_1 = arith.constant 0 : i32
    return %c0_i32, %c0_i32_0 : i32, i32
  }
  func.func @transform_3(%arg0: i32) -> (i32, i32) {
    %c0_i32 = arith.constant 0 : i32
    %c0_i32_0 = arith.constant 0 : i32
    %c0_i32_1 = arith.constant 0 : i32
    return %c0_i32, %c0_i32_0 : i32, i32
  }
  func.func @transform_4(%arg0: i32) -> (i32, i32) {
    %c0_i32 = arith.constant 0 : i32
    %c0_i32_0 = arith.constant 0 : i32
    %c0_i32_1 = arith.constant 0 : i32
    return %c0_i32, %c0_i32_0 : i32, i32
  }
  func.func @transform_5(%arg0: i32) -> (i32, i32) {
    %c0_i32 = arith.constant 0 : i32
    %c0_i32_0 = arith.constant 0 : i32
    %c0_i32_1 = arith.constant 0 : i32
    return %c0_i32, %c0_i32_0 : i32, i32
  }
  func.func @transform_6(%arg0: i32) -> (i32, i32) {
    %c0_i32 = arith.constant 0 : i32
    %c0_i32_0 = arith.constant 0 : i32
    %c0_i32_1 = arith.constant 0 : i32
    return %c0_i32, %c0_i32_0 : i32, i32
  }
  func.func @transform_7(%arg0: i32) -> (i32, i32) {
    %c0_i32 = arith.constant 0 : i32
    %c0_i32_0 = arith.constant 0 : i32
    return %c0_i32, %arg0 : i32, i32
  }
}

</mosaic_0001>

<llo_original>
// kernel: tpu_custom_call.1
$region0: #{tpu_custom_call.1}
  #allocation0 [shape = 'u32[]', space=smem, size = 0x4, offset = 0x4, fixed_abs, tag = 'smem constant byte address 0x4 - core index']
  #allocation1 [shape = 'u32[144,128]{1,0:T(1,128)}', space=vmem, size = 0x12000, scoped, tag = 'internal scratch']
  %s0 = inlined_call_operand.vmem [shape: f32[13,256], index: 0, kind: input, shape index: {}]
  %s1 = inlined_call_operand.vmem [shape: f32[64,13], index: 1, kind: input, shape index: {}]
  %s2 = inlined_call_operand.vmem [shape: f32[64,1], index: 2, kind: input, shape index: {}]
  %s3 = inlined_call_operand.vmem [shape: f32[32,64], index: 3, kind: input, shape index: {}]
  %s4 = inlined_call_operand.vmem [shape: f32[32,1], index: 4, kind: input, shape index: {}]
  %s5 = inlined_call_operand.vmem [shape: f32[2,32], index: 5, kind: input, shape index: {}]
  %s6 = inlined_call_operand.vmem [shape: f32[2,1], index: 6, kind: input, shape index: {}]
  %s7 = inlined_call_operand.hbm [shape: f32[2,256], index: 7, kind: output, shape index: {}]
  %s8 = sld [smem:[#allocation0]]
  $region99: #{tpu_custom_call.1} parent=0
    _
  %s10 = ssub.s32 1, %s8
  %s11 = scalar_select 0, %s10, %s8
  $region1: #{tpu_custom_call.1} parent=0
    #allocation2 [shape = 'u8[16384]{0}', space=vmem, size = 0x4000, scoped, tag = 'input window, operand 0']
    #allocation3 [shape = 'u8[2048]{0}', space=vmem, size = 0x800, scoped, tag = 'output window, operand 0']
    #allocation4 [shape = 's32[2]{0}', space=sflag, size = 0x8, scoped, tag = 'scoped memory for tpu_custom_call.1']
    %12 = vsyncpa [#allocation4], 0
    %s13 = scalar_lea.sflag [#allocation4], 1
    %14 = vsyncpa %s13, 0
    loop: start=0, step=1, limit=4
    $region2: #{tpu_custom_call.1} parent=1 // loop_pre_header
      _
    $region3: #{tpu_custom_call.1} parent=1 // loop_header
      %s16 = sphi 0, %s20
      %p17 = scmp.ge.s32.totalorder %s16, 4
      %s26 = sphi 0, %s28
      %s29 = sphi 0, %s26
      %s30 = sphi 0, %s29
      %s46 = sphi 0, %s30
      %s50 = sphi 0, %s50
      %s52 = sphi 0, %s50
      %s53 = sphi 0, %s52
      %s67 = sphi 0, %s53
      %s71 = sphi 0, %s71
      %s73 = sphi 0, %s71
      %s74 = sphi 0, %s73
      %s88 = sphi 0, %s74
      %s92 = sphi 0, %s92
      %s94 = sphi 0, %s92
      %s95 = sphi 0, %s94
      %s109 = sphi 0, %s95
      %s113 = sphi 0, %s113
      %s115 = sphi 0, %s113
      %s116 = sphi 0, %s115
      %s130 = sphi 0, %s116
      %s134 = sphi 0, %s134
      %s136 = sphi 0, %s134
      %s137 = sphi 0, %s136
      %s151 = sphi 0, %s137
      %s155 = sphi 0, %s155
      %s157 = sphi 0, %s155
      %s158 = sphi 0, %s157
      %s172 = sphi 0, %s158
      %s178 = sphi 0, %s180
      %s181 = sphi 0, %s178
      %s182 = sphi 0, %s181
      %s198 = sphi 0, %s182
    $region4: #{tpu_custom_call.1} parent=1 // loop_header_branch
      %19 = sbr.rel (%p17) target = $region8
    $region5: #{tpu_custom_call.1} parent=1 // loop_body
      %s21 = ssub.s32 %s16, 1
      %s22 = ssub.s32 %s16, 2
      %s23 = sadd.s32 %s16, 1
      %s24 = ssub.s32 %s16, %s23
      %p25 = scmp.eq.s32.totalorder %s24, 0
      %s27 = sadd.s32 %s26, 1
      %s28 = scalar_select %p25, %s26, %s27
      %p31 = pneg %p25
      %p32 = scmp.eq.s32.totalorder %s16, 1
      %p33 = por %p31, %p32
      %p34 = scmp.ne.s32.totalorder %s26, %s29
      %p35 = scmp.eq.s32.totalorder %s16, 0
      %p36 = por %p34, %p35
      %p37 = scmp.ne.s32.totalorder %s26, %s29
      %p38 = scmp.eq.s32.totalorder %s21, 1
      %p39 = por %p37, %p38
      %p40 = scmp.ne.s32.totalorder %s29, %s30
      %p41 = scmp.eq.s32.totalorder %s21, 0
      %p42 = por %p40, %p41
      %p43 = scmp.ne.s32.totalorder %s29, %s30
      %p44 = scmp.eq.s32.totalorder %s22, 1
      %p45 = por %p43, %p44
      %p47 = scmp.ne.s32.totalorder %s30, %s46
      %p48 = scmp.eq.s32.totalorder %s22, 0
      %p49 = por %p47, %p48
      %s51 = sadd.s32 %s50, 1
      %p54 = scmp.eq.s32.totalorder %s16, 1
      %p55 = scmp.ne.s32.totalorder %s50, %s52
      %p56 = scmp.eq.s32.totalorder %s16, 0
      %p57 = por %p55, %p56
      %p58 = scmp.ne.s32.totalorder %s50, %s52
      %p59 = scmp.eq.s32.totalorder %s21, 1
      %p60 = por %p58, %p59
      %p61 = scmp.ne.s32.totalorder %s52, %s53
      %p62 = scmp.eq.s32.totalorder %s21, 0
      %p63 = por %p61, %p62
      %p64 = scmp.ne.s32.totalorder %s52, %s53
      %p65 = scmp.eq.s32.totalorder %s22, 1
      %p66 = por %p64, %p65
      %p68 = scmp.ne.s32.totalorder %s53, %s67
      %p69 = scmp.eq.s32.totalorder %s22, 0
      %p70 = por %p68, %p69
      %s72 = sadd.s32 %s71, 1
      %p75 = scmp.eq.s32.totalorder %s16, 1
      %p76 = scmp.ne.s32.totalorder %s71, %s73
      %p77 = scmp.eq.s32.totalorder %s16, 0
      %p78 = por %p76, %p77
      %p79 = scmp.ne.s32.totalorder %s71, %s73
      %p80 = scmp.eq.s32.totalorder %s21, 1
      %p81 = por %p79, %p80
      %p82 = scmp.ne.s32.totalorder %s73, %s74
      %p83 = scmp.eq.s32.totalorder %s21, 0
      %p84 = por %p82, %p83
      %p85 = scmp.ne.s32.totalorder %s73, %s74
      %p86 = scmp.eq.s32.totalorder %s22, 1
      %p87 = por %p85, %p86
      %p89 = scmp.ne.s32.totalorder %s74, %s88
      %p90 = scmp.eq.s32.totalorder %s22, 0
      %p91 = por %p89, %p90
      %s93 = sadd.s32 %s92, 1
      %p96 = scmp.eq.s32.totalorder %s16, 1
      %p97 = scmp.ne.s32.totalorder %s92, %s94
      %p98 = scmp.eq.s32.totalorder %s16, 0
      %p99 = por %p97, %p98
      %p100 = scmp.ne.s32.totalorder %s92, %s94
      %p101 = scmp.eq.s32.totalorder %s21, 1
      %p102 = por %p100, %p101
      %p103 = scmp.ne.s32.totalorder %s94, %s95
      %p104 = scmp.eq.s32.totalorder %s21, 0
      %p105 = por %p103, %p104
      %p106 = scmp.ne.s32.totalorder %s94, %s95
      %p107 = scmp.eq.s32.totalorder %s22, 1
      %p108 = por %p106, %p107
      %p110 = scmp.ne.s32.totalorder %s95, %s109
      %p111 = scmp.eq.s32.totalorder %s22, 0
      %p112 = por %p110, %p111
      %s114 = sadd.s32 %s113, 1
      %p117 = scmp.eq.s32.totalorder %s16, 1
      %p118 = scmp.ne.s32.totalorder %s113, %s115
      %p119 = scmp.eq.s32.totalorder %s16, 0
      %p120 = por %p118, %p119
      %p121 = scmp.ne.s32.totalorder %s113, %s115
      %p122 = scmp.eq.s32.totalorder %s21, 1
      %p123 = por %p121, %p122
      %p124 = scmp.ne.s32.totalorder %s115, %s116
      %p125 = scmp.eq.s32.totalorder %s21, 0
      %p126 = por %p124, %p125
      %p127 = scmp.ne.s32.totalorder %s115, %s116
      %p128 = scmp.eq.s32.totalorder %s22, 1
      %p129 = por %p127, %p128
      %p131 = scmp.ne.s32.totalorder %s116, %s130
      %p132 = scmp.eq.s32.totalorder %s22, 0
      %p133 = por %p131, %p132
      %s135 = sadd.s32 %s134, 1
      %p138 = scmp.eq.s32.totalorder %s16, 1
      %p139 = scmp.ne.s32.totalorder %s134, %s136
      %p140 = scmp.eq.s32.totalorder %s16, 0
      %p141 = por %p139, %p140
      %p142 = scmp.ne.s32.totalorder %s134, %s136
      %p143 = scmp.eq.s32.totalorder %s21, 1
      %p144 = por %p142, %p143
      %p145 = scmp.ne.s32.totalorder %s136, %s137
      %p146 = scmp.eq.s32.totalorder %s21, 0
      %p147 = por %p145, %p146
      %p148 = scmp.ne.s32.totalorder %s136, %s137
      %p149 = scmp.eq.s32.totalorder %s22, 1
      %p150 = por %p148, %p149
      %p152 = scmp.ne.s32.totalorder %s137, %s151
      %p153 = scmp.eq.s32.totalorder %s22, 0
      %p154 = por %p152, %p153
      %s156 = sadd.s32 %s155, 1
      %p159 = scmp.eq.s32.totalorder %s16, 1
      %p160 = scmp.ne.s32.totalorder %s155, %s157
      %p161 = scmp.eq.s32.totalorder %s16, 0
      %p162 = por %p160, %p161
      %p163 = scmp.ne.s32.totalorder %s155, %s157
      %p164 = scmp.eq.s32.totalorder %s21, 1
      %p165 = por %p163, %p164
      %p166 = scmp.ne.s32.totalorder %s157, %s158
      %p167 = scmp.eq.s32.totalorder %s21, 0
      %p168 = por %p166, %p167
      %p169 = scmp.ne.s32.totalorder %s157, %s158
      %p170 = scmp.eq.s32.totalorder %s22, 1
      %p171 = por %p169, %p170
      %p173 = scmp.ne.s32.totalorder %s158, %s172
      %p174 = scmp.eq.s32.totalorder %s22, 0
      %p175 = por %p173, %p174
      %s176 = ssub.s32 %s16, %s23
      %p177 = scmp.eq.s32.totalorder %s176, 0
      %s179 = sadd.s32 %s178, 1
      %s180 = scalar_select %p177, %s178, %s179
      %p183 = pneg %p177
      %p184 = scmp.eq.s32.totalorder %s16, 1
      %p185 = por %p183, %p184
      %p186 = scmp.ne.s32.totalorder %s178, %s181
      %p187 = scmp.eq.s32.totalorder %s16, 0
      %p188 = por %p186, %p187
      %p189 = scmp.ne.s32.totalorder %s178, %s181
      %p190 = scmp.eq.s32.totalorder %s21, 1
      %p191 = por %p189, %p190
      %p192 = scmp.ne.s32.totalorder %s181, %s182
      %p193 = scmp.eq.s32.totalorder %s21, 0
      %p194 = por %p192, %p193
      %p195 = scmp.ne.s32.totalorder %s181, %s182
      %p196 = scmp.eq.s32.totalorder %s22, 1
      %p197 = por %p195, %p196
      %p199 = scmp.ne.s32.totalorder %s182, %s198
      %p200 = scmp.eq.s32.totalorder %s22, 0
      %p201 = por %p199, %p200
      %p202 = scmp.le.s32.totalorder 1, %s16
      %p203 = scmp.lt.s32.totalorder %s16, 3
      %p204 = pnand %p202, %p203
      %p205 = pneg %p204
      // Predicated region
      $region9: #{tpu_custom_call.1} parent=5 // pred_check
        _
      $region10: #{tpu_custom_call.1} parent=5 // pred_check_branch
        %207 = sbr.rel (%p204) target = $region12
      $region11: #{tpu_custom_call.1} parent=5 // pred_region
        %s208 = ssub.s32 %s16, 1
        // Predicated region
        $region13: #{tpu_custom_call.1} parent=11 // pred_check
          %p209 = pneg %p63
        $region14: #{tpu_custom_call.1} parent=11 // pred_check_branch
          %211 = sbr.rel (%p209) target = $region16
        $region15: #{tpu_custom_call.1} parent=11 // pred_region
          _
        $region16: #{tpu_custom_call.1} parent=11 // pred_fallthru
          _
        // Predicated region
        $region17: #{tpu_custom_call.1} parent=11 // pred_check
          %p212 = pneg %p84
        $region18: #{tpu_custom_call.1} parent=11 // pred_check_branch
          %214 = sbr.rel (%p212) target = $region20
        $region19: #{tpu_custom_call.1} parent=11 // pred_region
          _
        $region20: #{tpu_custom_call.1} parent=11 // pred_fallthru
          _
        // Predicated region
        $region21: #{tpu_custom_call.1} parent=11 // pred_check
          %p215 = pneg %p105
        $region22: #{tpu_custom_call.1} parent=11 // pred_check_branch
          %217 = sbr.rel (%p215) target = $region24
        $region23: #{tpu_custom_call.1} parent=11 // pred_region
          _
        $region24: #{tpu_custom_call.1} parent=11 // pred_fallthru
          _
        // Predicated region
        $region25: #{tpu_custom_call.1} parent=11 // pred_check
          %p218 = pneg %p126
        $region26: #{tpu_custom_call.1} parent=11 // pred_check_branch
          %220 = sbr.rel (%p218) target = $region28
        $region27: #{tpu_custom_call.1} parent=11 // pred_region
          _
        $region28: #{tpu_custom_call.1} parent=11 // pred_fallthru
          _
        // Predicated region
        $region29: #{tpu_custom_call.1} parent=11 // pred_check
          %p221 = pneg %p147
        $region30: #{tpu_custom_call.1} parent=11 // pred_check_branch
          %223 = sbr.rel (%p221) target = $region32
        $region31: #{tpu_custom_call.1} parent=11 // pred_region
          _
        $region32: #{tpu_custom_call.1} parent=11 // pred_fallthru
          _
        // Predicated region
        $region33: #{tpu_custom_call.1} parent=11 // pred_check
          %p224 = pneg %p168
        $region34: #{tpu_custom_call.1} parent=11 // pred_check_branch
          %226 = sbr.rel (%p224) target = $region36
        $region35: #{tpu_custom_call.1} parent=11 // pred_region
          _
        $region36: #{tpu_custom_call.1} parent=11 // pred_fallthru
          _
      $region12: #{tpu_custom_call.1} parent=5 // pred_fallthru
        _
      %p227 = scmp.lt.s32.totalorder %s16, 2
      // Predicated region
      $region37: #{tpu_custom_call.1} parent=5 // pred_check
        %p228 = pneg %p227
      $region38: #{tpu_custom_call.1} parent=5 // pred_check_branch
        %230 = sbr.rel (%p228) target = $region40
      $region39: #{tpu_custom_call.1} parent=5 // pred_region
        // Predicated region
        $region41: #{tpu_custom_call.1} parent=39 // pred_check
          %p231 = pneg %p36
        $region42: #{tpu_custom_call.1} parent=39 // pred_check_branch
          %233 = sbr.rel (%p231) target = $region44
        $region43: #{tpu_custom_call.1} parent=39 // pred_region
          %s234 = sand.u32 %s26, 1
          %s235 = sand.u32 %s26, 1
          %s236 = smul.addr %s235, 16
          %s237 = scalar_lea.vmem [#allocation2], %s236
          %s238 = smul.addr %s16, 8
          %s239 = scalar_lea.vmem %s0, %s238
          // Predicated region
          $region45: #{tpu_custom_call.1} parent=43 // pred_check
            _
          $region46: #{tpu_custom_call.1} parent=43 // pred_check_branch
            %241 = sbr.rel (0) target = $region48
          $region47: #{tpu_custom_call.1} parent=43 // pred_region
            // Predicated region
            $region49: #{tpu_custom_call.1} parent=47 // pred_check
              _
            $region50: #{tpu_custom_call.1} parent=47 // pred_check_branch
              %243 = sbr.rel (0) target = $region52
            $region51: #{tpu_custom_call.1} parent=47 // pred_region
              // Predicated region
              $region64: #{tpu_custom_call.1} parent=51 // pred_check
                _
              $region65: #{tpu_custom_call.1} parent=51 // pred_check_branch
                %261 = sbr.rel (0) target = $region67
              $region66: #{tpu_custom_call.1} parent=51 // pred_region
                loop: start=0, step=1, limit=1
                $region68: #{tpu_custom_call.1} parent=66 // loop_pre_header
                  _
                $region69: #{tpu_custom_call.1} parent=66 // loop_header
                  %s263 = sphi 0, %s267
                  %p264 = scmp.ge.s32.totalorder %s263, 1
                  %s268 = sphi %s239, %s239
                  %s269 = sphi %s237, %s237
                $region70: #{tpu_custom_call.1} parent=66 // loop_header_branch
                  %266 = sbr.rel (%p264) target = $region74
                $region71: #{tpu_custom_call.1} parent=66 // loop_body
                  %v270 = vld [vmem:[%s268] sm:$0xff]
                  %271 = vst [vmem:[%s269] sm:$0xff] %v270
                  %v272 = vld [vmem:[%s268 + $0x10] sm:$0xff]
                  %273 = vst [vmem:[%s269 + $0x8] sm:$0xff] %v272
                $region72: #{tpu_custom_call.1} parent=66 // loop_footer
                  %s267 = sadd.s32 1, %s263
                $region73: #{tpu_custom_call.1} parent=66 // loop_footer_branch
                  %262 = sbr.rel target = $region69
                $region74: #{tpu_custom_call.1} parent=66 // loop_exit
                  _
              $region67: #{tpu_custom_call.1} parent=51 // pred_fallthru
                _
              // Predicated region
              $region75: #{tpu_custom_call.1} parent=51 // pred_check
                _
              $region76: #{tpu_custom_call.1} parent=51 // pred_check_branch
                %275 = sbr.rel target = $region78
              $region77: #{tpu_custom_call.1} parent=51 // pred_region
                _
              $region78: #{tpu_custom_call.1} parent=51 // pred_fallthru
                _
            $region52: #{tpu_custom_call.1} parent=47 // pred_fallthru
              _
            // Predicated region
            $region53: #{tpu_custom_call.1} parent=47 // pred_check
              _
            $region54: #{tpu_custom_call.1} parent=47 // pred_check_branch
              %245 = sbr.rel target = $region56
            $region55: #{tpu_custom_call.1} parent=47 // pred_region
              %s247 = ssub.s32 256, 1
              loop: start=0, step=1, limit=1
              $region57: #{tpu_custom_call.1} parent=55 // loop_pre_header
                _
              $region58: #{tpu_custom_call.1} parent=55 // loop_header
                %s249 = sphi 0, %s253
                %p250 = scmp.ge.s32.totalorder %s249, 1
                %s254 = sphi %s239, %s239
                %s255 = sphi %s237, %s237
              $region59: #{tpu_custom_call.1} parent=55 // loop_header_branch
                %252 = sbr.rel (%p250) target = $region63
              $region60: #{tpu_custom_call.1} parent=55 // loop_body
                %v256 = vld [vmem:[%s254] sm:%s247]
                %257 = vst [vmem:[%s255] sm:%s247] %v256
                %v258 = vld [vmem:[%s254 + $0x10] sm:%s247]
                %259 = vst [vmem:[%s255 + $0x8] sm:%s247] %v258
              $region61: #{tpu_custom_call.1} parent=55 // loop_footer
                %s253 = sadd.s32 1, %s249
              $region62: #{tpu_custom_call.1} parent=55 // loop_footer_branch
                %248 = sbr.rel target = $region58
              $region63: #{tpu_custom_call.1} parent=55 // loop_exit
                _
            $region56: #{tpu_custom_call.1} parent=47 // pred_fallthru
              _
          $region48: #{tpu_custom_call.1} parent=43 // pred_fallthru
            _
          %276 = vnop
        $region44: #{tpu_custom_call.1} parent=39 // pred_fallthru
          _
      $region40: #{tpu_custom_call.1} parent=5 // pred_fallthru
        _
      %p277 = scmp.le.s32.totalorder 1, %s16
      %p278 = scmp.lt.s32.totalorder %s16, 3
      %p279 = pnand %p277, %p278
      %p280 = pneg %p279
      // Predicated region
      $region79: #{tpu_custom_call.1} parent=5 // pred_check
        _
      $region80: #{tpu_custom_call.1} parent=5 // pred_check_branch
        %282 = sbr.rel (%p279) target = $region82
      $region81: #{tpu_custom_call.1} parent=5 // pred_region
        %s283 = ssub.s32 %s16, 1
        %s284 = sand.u32 %s29, 1
        %s285 = sand.u32 %s29, 1
        %s286 = smul.addr %s285, 16
        %s287 = scalar_lea.vmem [#allocation2], %s286
        // Predicated region
        $region83: #{tpu_custom_call.1} parent=81 // pred_check
          %p288 = pneg %p42
        $region84: #{tpu_custom_call.1} parent=81 // pred_check_branch
          %290 = sbr.rel (%p288) target = $region86
        $region85: #{tpu_custom_call.1} parent=81 // pred_region
          _
        $region86: #{tpu_custom_call.1} parent=81 // pred_fallthru
          _
        %s291 = sand.u32 %s29, 1
        %s292 = sand.u32 %s29, 1
        %s293 = smul.addr %s292, 16
        %s294 = scalar_lea.vmem [#allocation2], %s293
        %p295 = pneg %p42
        %p296 = pneg %p39
        %p297 = pneg %p63
        %p298 = pneg %p60
        %p299 = pneg %p84
        %p300 = pneg %p81
        %p301 = pneg %p105
        %p302 = pneg %p102
        %p303 = pneg %p126
        %p304 = pneg %p123
        %p305 = pneg %p147
        %p306 = pneg %p144
        %p307 = pneg %p168
        %p308 = pneg %p165
        %p309 = pneg %p194
        %p310 = pneg %p191
        %s311 = sand.u32 %s181, 1
        %s312 = scalar_lea.sflag [#allocation4], %s311
        %s313 = sand.u32 %s181, 1
        %s314 = smul.addr %s313, 2
        %s315 = scalar_lea.vmem [#allocation3], %s314
        %v316 = vld [vmem:[%s287] sm:$0xff]
        %v317 = vld [vmem:[%s287 + $0x8] sm:$0x1f]
        %v318 = vld [vmem:[%s1] sm:$0xff]
        %v319 = vld [vmem:[%s1 + $0x8] sm:$0xff]
        %v320 = vld [vmem:[%s1 + $0x10] sm:$0xff]
        %v321 = vld [vmem:[%s1 + $0x18] sm:$0xff]
        %v322 = vld [vmem:[%s1 + $0x20] sm:$0xff]
        %v323 = vld [vmem:[%s1 + $0x28] sm:$0xff]
        %v324 = vld [vmem:[%s1 + $0x30] sm:$0xff]
        %v325 = vld [vmem:[%s1 + $0x38] sm:$0xff]
        %v326 = vld [vmem:[%s2] sm:$0xff]
        %v327 = vld [vmem:[%s2 + $0x8] sm:$0xff]
        %v328 = vld [vmem:[%s2 + $0x10] sm:$0xff]
        %v329 = vld [vmem:[%s2 + $0x18] sm:$0xff]
        %v330 = vld [vmem:[%s2 + $0x20] sm:$0xff]
        %v331 = vld [vmem:[%s2 + $0x28] sm:$0xff]
        %v332 = vld [vmem:[%s2 + $0x30] sm:$0xff]
        %v333 = vld [vmem:[%s2 + $0x38] sm:$0xff]
        %335 = vset.pattern.permute.xlu0 0
        %336 = vperm.xlu0 %335, %v326
        %v337 = vpop.permute.xlu0 %336
        %340 = vset.pattern.permute.xlu0 0
        %341 = vperm.xlu0 %340, %v327
        %v342 = vpop.permute.xlu0 %341
        %345 = vset.pattern.permute.xlu0 0
        %346 = vperm.xlu0 %345, %v328
        %v347 = vpop.permute.xlu0 %346
        %350 = vset.pattern.permute.xlu0 0
        %351 = vperm.xlu0 %350, %v329
        %v352 = vpop.permute.xlu0 %351
        %355 = vset.pattern.permute.xlu0 0
        %356 = vperm.xlu0 %355, %v330
        %v357 = vpop.permute.xlu0 %356
        %360 = vset.pattern.permute.xlu0 0
        %361 = vperm.xlu0 %360, %v331
        %v362 = vpop.permute.xlu0 %361
        %365 = vset.pattern.permute.xlu0 0
        %366 = vperm.xlu0 %365, %v332
        %v367 = vpop.permute.xlu0 %366
        %370 = vset.pattern.permute.xlu0 0
        %371 = vperm.xlu0 %370, %v333
        %v372 = vpop.permute.xlu0 %371
        %vm374 = vcmask 105472
        %v376 = vsel %vm374, %v318, 0
        %v379 = vsel %vm374, %v319, 0
        %v382 = vsel %vm374, %v320, 0
        %v385 = vsel %vm374, %v321, 0
        %v388 = vsel %vm374, %v322, 0
        %v391 = vsel %vm374, %v323, 0
        %v394 = vsel %vm374, %v324, 0
        %v397 = vsel %vm374, %v325, 0
        %vm399 = vcmask 1044480
        %v401 = vsel %vm399, %v317, 0
        %403 = vmatprep.subr.mxu0 0.0
        %404 = vmatpush1.msra.mxu0 0.0
        %405 = vmatprep.subr.mxu0 0.0
        %406 = vmatpush1.msra.mxu0 0.0
        %407 = vmatprep.subr.mxu0 0.0
        %408 = vmatpush1.msra.mxu0 0.0
        %409 = vmatprep.subr.mxu0 0.0
        %410 = vmatpush1.msra.mxu0 0.0
        %411 = vmatprep.subr.mxu0 0.0
        %412 = vmatpush1.msra.mxu0 0.0
        %413 = vmatprep.subr.mxu0 0.0
        %414 = vmatpush1.msra.mxu0 0.0
        %415 = vmatprep.subr.mxu0 0.0
        %416 = vmatpush1.msra.mxu0 0.0
        %417 = vmatprep.subr.mxu0 0.0
        %418 = vmatpush1.msra.mxu0 0.0
        %419 = vmatprep.subr.mxu0 0.0
        %420 = vmatpush1.msra.mxu0 0.0
        %421 = vmatprep.subr.mxu0 0.0
        %422 = vmatpush1.msra.mxu0 0.0
        %423 = vmatprep.subr.mxu0 0.0
        %424 = vmatpush1.msra.mxu0 0.0
        %425 = vmatprep.subr.mxu0 0.0
        %426 = vmatpush1.msra.mxu0 0.0
        %427 = vmatprep.subr.mxu0 0.0
        %428 = vmatpush1.msra.mxu0 0.0
        %429 = vmatprep.subr.mxu0 0.0
        %430 = vmatpush1.msra.mxu0 0.0
        %431 = vmatprep.subr.mxu0 0.0
        %432 = vmatpush1.msra.mxu0 %v401
        %433 = vmatprep.subr.mxu0 0.0
        %434 = vmatpush1.msra.mxu0 %v316
        %435 = vmatprep.subr.mxu0 0.0
        %436 = vmatpush2.msra.mxu0 0.0
        %437 = vmatprep.subr.mxu0 0.0
        %438 = vmatpush2.msra.mxu0 0.0
        %439 = vmatprep.subr.mxu0 0.0
        %440 = vmatpush2.msra.mxu0 0.0
        %441 = vmatprep.subr.mxu0 0.0
        %442 = vmatpush2.msra.mxu0 0.0
        %443 = vmatprep.subr.mxu0 0.0
        %444 = vmatpush2.msra.mxu0 0.0
        %445 = vmatprep.subr.mxu0 0.0
        %446 = vmatpush2.msra.mxu0 0.0
        %447 = vmatprep.subr.mxu0 0.0
        %448 = vmatpush2.msra.mxu0 0.0
        %449 = vmatprep.subr.mxu0 0.0
        %450 = vmatpush2.msra.mxu0 0.0
        %451 = vmatprep.subr.mxu0 0.0
        %452 = vmatpush2.msra.mxu0 0.0
        %453 = vmatprep.subr.mxu0 0.0
        %454 = vmatpush2.msra.mxu0 0.0
        %455 = vmatprep.subr.mxu0 0.0
        %456 = vmatpush2.msra.mxu0 0.0
        %457 = vmatprep.subr.mxu0 0.0
        %458 = vmatpush2.msra.mxu0 0.0
        %459 = vmatprep.subr.mxu0 0.0
        %460 = vmatpush2.msra.mxu0 0.0
        %461 = vmatprep.subr.mxu0 0.0
        %462 = vmatpush2.msra.mxu0 0.0
        %463 = vmatprep.subr.mxu0 0.0
        %464 = vmatpush2.msra.mxu0 0.0
        %465 = vmatprep.subr.mxu0 0.0
        %466 = vmatpush2.msra.mxu0 0.0
        %467 = vmatprep.mubr.f32.mxu0 0.0
        %468 = vmatmul.mubr.f32.gmra.mxu0 %v376
        %v469 = vpop.f32.mrf.mxu0
        %v470 = vadd.f32 %v337, %v469
        %v471 = vpop.f32.mrf.mxu0
        %472 = vmatprep.mubr.f32.mxu0 0.0
        %473 = vmatmul.mubr.f32.gmra.mxu0 %v379
        %v474 = vpop.f32.mrf.mxu0
        %v475 = vadd.f32 %v342, %v474
        %v476 = vpop.f32.mrf.mxu0
        %477 = vmatprep.mubr.f32.mxu0 0.0
        %478 = vmatmul.mubr.f32.gmra.mxu0 %v382
        %v479 = vpop.f32.mrf.mxu0
        %v480 = vadd.f32 %v347, %v479
        %v481 = vpop.f32.mrf.mxu0
        %482 = vmatprep.mubr.f32.mxu0 0.0
        %483 = vmatmul.mubr.f32.gmra.mxu0 %v385
        %v484 = vpop.f32.mrf.mxu0
        %v485 = vadd.f32 %v352, %v484
        %v486 = vpop.f32.mrf.mxu0
        %487 = vmatprep.mubr.f32.mxu0 0.0
        %488 = vmatmul.mubr.f32.gmra.mxu0 %v388
        %v489 = vpop.f32.mrf.mxu0
        %v490 = vadd.f32 %v357, %v489
        %v491 = vpop.f32.mrf.mxu0
        %492 = vmatprep.mubr.f32.mxu0 0.0
        %493 = vmatmul.mubr.f32.gmra.mxu0 %v391
        %v494 = vpop.f32.mrf.mxu0
        %v495 = vadd.f32 %v362, %v494
        %v496 = vpop.f32.mrf.mxu0
        %497 = vmatprep.mubr.f32.mxu0 0.0
        %498 = vmatmul.mubr.f32.gmra.mxu0 %v394
        %v499 = vpop.f32.mrf.mxu0
        %v500 = vadd.f32 %v367, %v499
        %v501 = vpop.f32.mrf.mxu0
        %502 = vmatprep.mubr.f32.mxu0 0.0
        %503 = vmatmul.mubr.f32.gmra.mxu0 %v397
        %v504 = vpop.f32.mrf.mxu0
        %v505 = vadd.f32 %v372, %v504
        %v506 = vpop.f32.mrf.mxu0
        %507 = vdwg.mxu0
        %v508 = vmax.f32 %v470, 0.0
        %v509 = vmax.f32 %v475, 0.0
        %v510 = vmax.f32 %v480, 0.0
        %v511 = vmax.f32 %v485, 0.0
        %v512 = vmax.f32 %v490, 0.0
        %v513 = vmax.f32 %v495, 0.0
        %v514 = vmax.f32 %v500, 0.0
        %v515 = vmax.f32 %v505, 0.0
        %v516 = vld [vmem:[%s3] sm:$0xff]
        %v517 = vld [vmem:[%s3 + $0x8] sm:$0xff]
        %v518 = vld [vmem:[%s3 + $0x10] sm:$0xff]
        %v519 = vld [vmem:[%s3 + $0x18] sm:$0xff]
        %v520 = vld [vmem:[%s4] sm:$0xff]
        %v521 = vld [vmem:[%s4 + $0x8] sm:$0xff]
        %v522 = vld [vmem:[%s4 + $0x10] sm:$0xff]
        %v523 = vld [vmem:[%s4 + $0x18] sm:$0xff]
        %525 = vset.pattern.permute.xlu0 0
        %526 = vperm.xlu0 %525, %v520
        %v527 = vpop.permute.xlu0 %526
        %530 = vset.pattern.permute.xlu0 0
        %531 = vperm.xlu0 %530, %v521
        %v532 = vpop.permute.xlu0 %531
        %535 = vset.pattern.permute.xlu0 0
        %536 = vperm.xlu0 %535, %v522
        %v537 = vpop.permute.xlu0 %536
        %540 = vset.pattern.permute.xlu0 0
        %541 = vperm.xlu0 %540, %v523
        %v542 = vpop.permute.xlu0 %541
        %vm544 = vcmask 523264
        %v546 = vsel %vm544, %v516, 0
        %v549 = vsel %vm544, %v517, 0
        %v552 = vsel %vm544, %v518, 0
        %v555 = vsel %vm544, %v519, 0
        %557 = vmatprep.subr.mxu0 0.0
        %558 = vmatpush1.msra.mxu0 0.0
        %559 = vmatprep.subr.mxu0 0.0
        %560 = vmatpush1.msra.mxu0 0.0
        %561 = vmatprep.subr.mxu0 0.0
        %562 = vmatpush1.msra.mxu0 0.0
        %563 = vmatprep.subr.mxu0 0.0
        %564 = vmatpush1.msra.mxu0 0.0
        %565 = vmatprep.subr.mxu0 0.0
        %566 = vmatpush1.msra.mxu0 0.0
        %567 = vmatprep.subr.mxu0 0.0
        %568 = vmatpush1.msra.mxu0 0.0
        %569 = vmatprep.subr.mxu0 0.0
        %570 = vmatpush1.msra.mxu0 0.0
        %571 = vmatprep.subr.mxu0 0.0
        %572 = vmatpush1.msra.mxu0 0.0
        %573 = vmatprep.subr.mxu0 0.0
        %574 = vmatpush1.msra.mxu0 %v515
        %575 = vmatprep.subr.mxu0 0.0
        %576 = vmatpush1.msra.mxu0 %v514
        %577 = vmatprep.subr.mxu0 0.0
        %578 = vmatpush1.msra.mxu0 %v513
        %579 = vmatprep.subr.mxu0 0.0
        %580 = vmatpush1.msra.mxu0 %v512
        %581 = vmatprep.subr.mxu0 0.0
        %582 = vmatpush1.msra.mxu0 %v511
        %583 = vmatprep.subr.mxu0 0.0
        %584 = vmatpush1.msra.mxu0 %v510
        %585 = vmatprep.subr.mxu0 0.0
        %586 = vmatpush1.msra.mxu0 %v509
        %587 = vmatprep.subr.mxu0 0.0
        %588 = vmatpush1.msra.mxu0 %v508
        %589 = vmatprep.subr.mxu0 0.0
        %590 = vmatpush2.msra.mxu0 0.0
        %591 = vmatprep.subr.mxu0 0.0
        %592 = vmatpush2.msra.mxu0 0.0
        %593 = vmatprep.subr.mxu0 0.0
        %594 = vmatpush2.msra.mxu0 0.0
        %595 = vmatprep.subr.mxu0 0.0
        %596 = vmatpush2.msra.mxu0 0.0
        %597 = vmatprep.subr.mxu0 0.0
        %598 = vmatpush2.msra.mxu0 0.0
        %599 = vmatprep.subr.mxu0 0.0
        %600 = vmatpush2.msra.mxu0 0.0
        %601 = vmatprep.subr.mxu0 0.0
        %602 = vmatpush2.msra.mxu0 0.0
        %603 = vmatprep.subr.mxu0 0.0
        %604 = vmatpush2.msra.mxu0 0.0
        %605 = vmatprep.subr.mxu0 0.0
        %606 = vmatpush2.msra.mxu0 0.0
        %607 = vmatprep.subr.mxu0 0.0
        %608 = vmatpush2.msra.mxu0 0.0
        %609 = vmatprep.subr.mxu0 0.0
        %610 = vmatpush2.msra.mxu0 0.0
        %611 = vmatprep.subr.mxu0 0.0
        %612 = vmatpush2.msra.mxu0 0.0
        %613 = vmatprep.subr.mxu0 0.0
        %614 = vmatpush2.msra.mxu0 0.0
        %615 = vmatprep.subr.mxu0 0.0
        %616 = vmatpush2.msra.mxu0 0.0
        %617 = vmatprep.subr.mxu0 0.0
        %618 = vmatpush2.msra.mxu0 0.0
        %619 = vmatprep.subr.mxu0 0.0
        %620 = vmatpush2.msra.mxu0 0.0
        %621 = vmatprep.mubr.f32.mxu0 0.0
        %622 = vmatmul.mubr.f32.gmra.mxu0 %v546
        %v623 = vpop.f32.mrf.mxu0
        %v624 = vadd.f32 %v527, %v623
        %v625 = vpop.f32.mrf.mxu0
        %626 = vmatprep.mubr.f32.mxu0 0.0
        %627 = vmatmul.mubr.f32.gmra.mxu0 %v549
        %v628 = vpop.f32.mrf.mxu0
        %v629 = vadd.f32 %v532, %v628
        %v630 = vpop.f32.mrf.mxu0
        %631 = vmatprep.mubr.f32.mxu0 0.0
        %632 = vmatmul.mubr.f32.gmra.mxu0 %v552
        %v633 = vpop.f32.mrf.mxu0
        %v634 = vadd.f32 %v537, %v633
        %v635 = vpop.f32.mrf.mxu0
        %636 = vmatprep.mubr.f32.mxu0 0.0
        %637 = vmatmul.mubr.f32.gmra.mxu0 %v555
        %v638 = vpop.f32.mrf.mxu0
        %v639 = vadd.f32 %v542, %v638
        %v640 = vpop.f32.mrf.mxu0
        %641 = vdwg.mxu0
        %v642 = vmax.f32 %v624, 0.0
        %v643 = vmax.f32 %v629, 0.0
        %v644 = vmax.f32 %v634, 0.0
        %v645 = vmax.f32 %v639, 0.0
        %v646 = vld [vmem:[%s5] sm:$0x3]
        %v647 = vld [vmem:[%s6] sm:$0x3]
        %649 = vset.pattern.permute.xlu0 0
        %650 = vperm.xlu0 %649, %v647
        %v651 = vpop.permute.xlu0 %650
        %vm653 = vcmask 261120
        %v655 = vsel %vm653, %v646, 0
        %657 = vmatprep.subr.mxu0 0.0
        %658 = vmatpush1.msra.mxu0 0.0
        %659 = vmatprep.subr.mxu0 0.0
        %660 = vmatpush1.msra.mxu0 0.0
        %661 = vmatprep.subr.mxu0 0.0
        %662 = vmatpush1.msra.mxu0 0.0
        %663 = vmatprep.subr.mxu0 0.0
        %664 = vmatpush1.msra.mxu0 0.0
        %665 = vmatprep.subr.mxu0 0.0
        %666 = vmatpush1.msra.mxu0 0.0
        %667 = vmatprep.subr.mxu0 0.0
        %668 = vmatpush1.msra.mxu0 0.0
        %669 = vmatprep.subr.mxu0 0.0
        %670 = vmatpush1.msra.mxu0 0.0
        %671 = vmatprep.subr.mxu0 0.0
        %672 = vmatpush1.msra.mxu0 0.0
        %673 = vmatprep.subr.mxu0 0.0
        %674 = vmatpush1.msra.mxu0 0.0
        %675 = vmatprep.subr.mxu0 0.0
        %676 = vmatpush1.msra.mxu0 0.0
        %677 = vmatprep.subr.mxu0 0.0
        %678 = vmatpush1.msra.mxu0 0.0
        %679 = vmatprep.subr.mxu0 0.0
        %680 = vmatpush1.msra.mxu0 0.0
        %681 = vmatprep.subr.mxu0 0.0
        %682 = vmatpush1.msra.mxu0 %v645
        %683 = vmatprep.subr.mxu0 0.0
        %684 = vmatpush1.msra.mxu0 %v644
        %685 = vmatprep.subr.mxu0 0.0
        %686 = vmatpush1.msra.mxu0 %v643
        %687 = vmatprep.subr.mxu0 0.0
        %688 = vmatpush1.msra.mxu0 %v642
        %689 = vmatprep.subr.mxu0 0.0
        %690 = vmatpush2.msra.mxu0 0.0
        %691 = vmatprep.subr.mxu0 0.0
        %692 = vmatpush2.msra.mxu0 0.0
        %693 = vmatprep.subr.mxu0 0.0
        %694 = vmatpush2.msra.mxu0 0.0
        %695 = vmatprep.subr.mxu0 0.0
        %696 = vmatpush2.msra.mxu0 0.0
        %697 = vmatprep.subr.mxu0 0.0
        %698 = vmatpush2.msra.mxu0 0.0
        %699 = vmatprep.subr.mxu0 0.0
        %700 = vmatpush2.msra.mxu0 0.0
        %701 = vmatprep.subr.mxu0 0.0
        %702 = vmatpush2.msra.mxu0 0.0
        %703 = vmatprep.subr.mxu0 0.0
        %704 = vmatpush2.msra.mxu0 0.0
        %705 = vmatprep.subr.mxu0 0.0
        %706 = vmatpush2.msra.mxu0 0.0
        %707 = vmatprep.subr.mxu0 0.0
        %708 = vmatpush2.msra.mxu0 0.0
        %709 = vmatprep.subr.mxu0 0.0
        %710 = vmatpush2.msra.mxu0 0.0
        %711 = vmatprep.subr.mxu0 0.0
        %712 = vmatpush2.msra.mxu0 0.0
        %713 = vmatprep.subr.mxu0 0.0
        %714 = vmatpush2.msra.mxu0 0.0
        %715 = vmatprep.subr.mxu0 0.0
        %716 = vmatpush2.msra.mxu0 0.0
        %717 = vmatprep.subr.mxu0 0.0
        %718 = vmatpush2.msra.mxu0 0.0
        %719 = vmatprep.subr.mxu0 0.0
        %720 = vmatpush2.msra.mxu0 0.0
        %721 = vmatprep.mubr.f32.mxu0 0.0
        %722 = vmatmul.mubr.f32.gmra.mxu0 %v655
        %v723 = vpop.f32.mrf.mxu0
        %v724 = vadd.f32 %v651, %v723
        %v725 = vpop.f32.mrf.mxu0
        %726 = vdwg.mxu0
        %727 = vst [vmem:[%s315] sm:$0x3] %v724
        %s728 = sand.u32 %s181, 1
        %s729 = scalar_lea.sflag [#allocation4], %s728
        %s730 = sand.u32 %s181, 1
        %s731 = smul.addr %s730, 2
        %s732 = scalar_lea.vmem [#allocation3], %s731
        // Predicated region
        $region87: #{tpu_custom_call.1} parent=81 // pred_check
          %p733 = pneg %p191
        $region88: #{tpu_custom_call.1} parent=81 // pred_check_branch
          %735 = sbr.rel (%p733) target = $region90
        $region89: #{tpu_custom_call.1} parent=81 // pred_region
          %s737 = ssub.s32 32, 32
          %738 = vsyncadd %s729, %s737
          %s739 = smul.addr %s21, 32
          %s740 = scalar_lea.hbm %s7, %s739
          %s742 = sshll.u32 %s732, 4
          %s743 = int_to_ptr.vmem [resolvable:$true] %s742
          %745 = dma.vmem_to_hbm [thread:$0]  %s743, 32, %s740, %s729
        $region90: #{tpu_custom_call.1} parent=81 // pred_fallthru
          _
      $region82: #{tpu_custom_call.1} parent=5 // pred_fallthru
        _
      %p746 = scmp.le.s32.totalorder 2, %s16
      // Predicated region
      $region91: #{tpu_custom_call.1} parent=5 // pred_check
        %p747 = pneg %p746
      $region92: #{tpu_custom_call.1} parent=5 // pred_check_branch
        %749 = sbr.rel (%p747) target = $region94
      $region93: #{tpu_custom_call.1} parent=5 // pred_region
        %s750 = ssub.s32 %s16, 2
        // Predicated region
        $region95: #{tpu_custom_call.1} parent=93 // pred_check
          %p751 = pneg %p197
        $region96: #{tpu_custom_call.1} parent=93 // pred_check_branch
          %753 = sbr.rel (%p751) target = $region98
        $region97: #{tpu_custom_call.1} parent=93 // pred_region
          %s754 = sand.u32 %s182, 1
          %s755 = scalar_lea.sflag [#allocation4], %s754
          %s756 = sand.u32 %s182, 1
          %s757 = smul.addr %s756, 2
          %s758 = scalar_lea.vmem [#allocation3], %s757
          %759 = dma.done %s755, 32
        $region98: #{tpu_custom_call.1} parent=93 // pred_fallthru
          _
      $region94: #{tpu_custom_call.1} parent=5 // pred_fallthru
        _
    $region6: #{tpu_custom_call.1} parent=1 // loop_footer
      %s20 = sadd.s32 1, %s16
    $region7: #{tpu_custom_call.1} parent=1 // loop_footer_branch
      %15 = sbr.rel target = $region3
    $region8: #{tpu_custom_call.1} parent=1 // loop_exit
      _
    %760 = vsyncpa [#allocation4], 1
    %s761 = scalar_lea.sflag [#allocation4], 1
    %762 = vsyncpa %s761, 1

</llo_original>
